<compile_context>
chip_gen: v6e
topology: v6e:2x2x1
jax: 0.10.0
libtpu: 0.0.40
codegen_flags: <defaults>
</compile_context>

<pallas_src>
import math

import numpy as np
import jax
import jax.numpy as jnp
from jax.experimental import pallas as pl
from jax.experimental.pallas import tpu as pltpu

EPS = 1e-5


def residual_forward(X, params, class_num):
    N, CIN, H, W = X.shape
    # The residual add Y + X only broadcasts for H == 13, W == 4 (Y collapses to (N,C,1,1)).
    assert CIN == 64 and H == 13 and W == 4
    C = class_num
    (W1, b1, g1, be1, W2, b2, g2, be2, W3, b3) = params
    CO1 = W1.shape[0]  # 256
    f32 = jnp.float32

    # ---- host-side packing (single rearrangement of X; weights/constants packed once) ----
    # A1[(h*N+n), ci*W+kw] = X[n, ci, h, kw]
    A1 = jnp.transpose(X, (2, 0, 1, 3)).reshape(H * N, CIN * W)              # (26, 256)
    # conv1 weight: B1[ci*W+kw, co] = W1[co, ci, 0, kw]
    B1 = jnp.transpose(W1[:, :, 0, :], (1, 2, 0)).reshape(CIN * W, CO1)      # (256, 256)
    # conv3 (1x1) packed so it reuses A1: B3p[ci*W+w', w*C+c] = W3[c,ci]*(w'==w)
    eye = jnp.eye(W, dtype=f32)
    B3p = (jnp.transpose(W3[:, :, 0, 0])[:, None, None, :]
           * eye[None, :, :, None]).reshape(CIN * W, W * C)                  # (256, 32)
    B13 = jnp.concatenate([B1, B3p], axis=1)                                 # (256, 288)
    # conv2 weight repacked for a single matmul: W2f[ch, h*C+c] = W2[c, ch, h, 0]
    W2f = jnp.transpose(W2[:, :, :, 0], (1, 2, 0)).reshape(CO1, H * C)       # (256, 104)
    # Block-diagonal mask: keep p[h*N+n, h'*C+c] only where h' == h.
    rowblk = jnp.arange(H * N) // N
    colblk = jnp.arange(H * C) // C
    Mdiag = (rowblk[:, None] == colblk[None, :]).astype(f32)                 # (26, 104)
    # SL sums over h and simultaneously replicates the result back to all 26 rows:
    # SL[r, r'] = 1 iff r' % N == r % N.
    rmod = jnp.arange(H * N) % N
    SL = (rmod[:, None] == rmod[None, :]).astype(f32)                        # (26, 26)
    # SR sums the (masked) column blocks and replicates over the W output columns:
    # SR[k', k] = 1 iff k' % C == k % C.
    kmodHC = jnp.arange(H * C) % C
    kmodWC = jnp.arange(W * C) % C
    SR = (kmodHC[:, None] == kmodWC[None, :]).astype(f32)                    # (104, 32)
    # bn1 / bn2 affines and conv3 bias, laid out for the packed kernel outputs.
    g1row = g1.reshape(1, CO1)
    be1row = be1.reshape(1, CO1)
    g2t = jnp.tile(g2, W).reshape(1, W * C)
    be2t = jnp.tile(be2, W).reshape(1, W * C)
    b3row = jnp.tile(b3, W).reshape(1, W * C)
    # NOTE: b1 / b2 are intentionally NOT passed: training-mode BN cancels them exactly.

    def kernel(a1_ref, b13_ref, g1_ref, be1_ref, w2_ref, m_ref, sl_ref, sr_ref,
               g2_ref, be2_ref, b3_ref, o_ref):
        # fused conv1 + conv3-skip: one MXU matmul
        y13 = jnp.dot(a1_ref[...], b13_ref[...], preferred_element_type=f32)
        y1 = y13[:, :CO1]                 # (H*N, 256) conv1 pre-BN  (128-aligned slice)
        y3 = y13[:, CO1:]                 # (H*N, W*C) conv3 skip, (w, c)-packed
        # bn1 (training mode: stats over the H*N = 26 samples) + ReLU
        m1 = jnp.mean(y1, axis=0, keepdims=True)
        d1 = y1 - m1
        v1 = jnp.mean(d1 * d1, axis=0, keepdims=True)
        y1 = jnp.maximum(d1 * jax.lax.rsqrt(v1 + EPS) * g1_ref[...] + be1_ref[...], 0.0)
        # conv2 (13,1): one matmul against the packed (256, H*C) weight, then the
        # block-diagonal (over h) reduction + residual broadcast via two tiny matmuls.
        p = jnp.dot(y1, w2_ref[...], preferred_element_type=f32)             # (26, 104)
        pm = p * m_ref[...]
        z = jnp.dot(jnp.dot(sl_ref[...], pm, preferred_element_type=f32),
                    sr_ref[...], preferred_element_type=f32)                 # (26, 32)
        # bn2 (training mode): z is the conv2 result replicated over (h, w), so the
        # row-stats equal the per-sample batch stats exactly.
        m2 = jnp.mean(z, axis=0, keepdims=True)
        d2 = z - m2
        v2 = jnp.mean(d2 * d2, axis=0, keepdims=True)
        y2 = d2 * jax.lax.rsqrt(v2 + EPS) * g2_ref[...] + be2_ref[...]
        # residual add + ReLU: single full-ref store
        # TODO(synk): PyTorch's in-place `Y += X` would reject this broadcast for every
        # valid input; we implement the out-of-place `Y + X` broadcast (the only
        # well-defined reading of the forward), matching the JAX reference.
        o_ref[...] = jnp.maximum(y2 + y3 + b3_ref[...], 0.0)

    operands = (A1, B13, g1row, be1row, W2f, Mdiag, SL, SR, g2t, be2t, b3row)
    out_elems = H * N * W * C
    flops = 2 * ((H * N) * (CIN * W) * (CO1 + W * C)
                 + (H * N) * CO1 * (H * C)
                 + (H * N) * (H * N) * (H * C)
                 + (H * N) * (H * C) * (W * C))
    bytes_accessed = 4 * (sum(int(np.prod(op.shape)) for op in operands) + out_elems)

    def full(shape):
        return pl.BlockSpec(shape, lambda i, _s=shape: (0,) * len(_s))

    out_flat = pl.pallas_call(
        kernel,
        out_shape=jax.ShapeDtypeStruct((H * N, W * C), f32),
        grid=(1,),
        in_specs=[full(op.shape) for op in operands],
        out_specs=full((H * N, W * C)),
        compiler_params=pltpu.CompilerParams(dimension_semantics=("arbitrary",)),
        cost_estimate=pl.CostEstimate(flops=flops, transcendentals=0,
                                      bytes_accessed=bytes_accessed),
    )(*operands)

    # (h, n, w, c) -> NCHW.  Training-mode BN couples the whole batch, so there is no
    # independent grid axis worth splitting across TensorCores at this size.
    return out_flat.reshape(H, N, W, C).transpose(1, 3, 0, 2)


def ref_forward(X, params):
    """Pure-JAX reference (training-mode BN, broadcasted residual add)."""
    (W1, b1, g1, be1, W2, b2, g2, be2, W3, b3) = params

    def conv(x, w, b):
        y = jax.lax.conv_general_dilated(
            x, w, window_strides=(1, 1), padding="VALID",
            dimension_numbers=("NCHW", "OIHW", "NCHW"),
            precision=jax.lax.Precision.HIGHEST)
        return y + b[None, :, None, None]

    def bn(x, g, be):
        m = jnp.mean(x, axis=(0, 2, 3), keepdims=True)
        v = jnp.mean((x - m) ** 2, axis=(0, 2, 3), keepdims=True)
        return (x - m) * jax.lax.rsqrt(v + EPS) * g[None, :, None, None] + be[None, :, None, None]

    Y = jax.nn.relu(bn(conv(X, W1, b1), g1, be1))
    Y = bn(conv(Y, W2, b2), g2, be2)
    Xp = conv(X, W3, b3)
    return jax.nn.relu(Y + Xp)


if __name__ == "__main__":
    class_num = 8
    N, CIN, H, W = 2, 64, 13, 4

    key = jax.random.PRNGKey(0)
    ks = jax.random.split(key, 11)

    def u(k, shape, fan_in):
        s = 1.0 / math.sqrt(fan_in)
        return jax.random.uniform(k, shape, jnp.float32, -s, s)

    W1 = u(ks[0], (256, 64, 1, 4), 64 * 4)
    b1 = u(ks[1], (256,), 64 * 4)
    W2 = u(ks[2], (class_num, 256, 13, 1), 256 * 13)
    b2 = u(ks[3], (class_num,), 256 * 13)
    W3 = u(ks[4], (class_num, 64, 1, 1), 64)
    b3 = u(ks[5], (class_num,), 64)
    g1 = 1.0 + 0.1 * jax.random.normal(ks[6], (256,), jnp.float32)
    be1 = 0.1 * jax.random.normal(ks[7], (256,), jnp.float32)
    g2 = 1.0 + 0.1 * jax.random.normal(ks[8], (class_num,), jnp.float32)
    be2 = 0.1 * jax.random.normal(ks[9], (class_num,), jnp.float32)
    params = (W1, b1, g1, be1, W2, b2, g2, be2, W3, b3)

    X = jax.random.normal(ks[10], (N, CIN, H, W), jnp.float32)

    fwd = jax.jit(residual_forward, static_argnums=(2,))
    out = jax.block_until_ready(fwd(X, params, class_num))

    ref = jax.block_until_ready(ref_forward(X, params))
    assert out.shape == (N, class_num, H, W)
    np.testing.assert_allclose(np.asarray(out), np.asarray(ref), rtol=2e-3, atol=2e-3)
    print("KERNEL_OK")
</pallas_src>

<mosaic_0001>
module attributes {stable_mosaic.version = 11 : i64} {
  func.func @kernel(%arg0: i32, %arg1: memref<26x256xf32, #tpu.memory_space<vmem>>, %arg2: memref<256x288xf32, #tpu.memory_space<vmem>>, %arg3: memref<1x256xf32, #tpu.memory_space<vmem>>, %arg4: memref<1x256xf32, #tpu.memory_space<vmem>>, %arg5: memref<256x104xf32, #tpu.memory_space<vmem>>, %arg6: memref<26x104xf32, #tpu.memory_space<vmem>>, %arg7: memref<26x26xf32, #tpu.memory_space<vmem>>, %arg8: memref<104x32xf32, #tpu.memory_space<vmem>>, %arg9: memref<1x32xf32, #tpu.memory_space<vmem>>, %arg10: memref<1x32xf32, #tpu.memory_space<vmem>>, %arg11: memref<1x32xf32, #tpu.memory_space<vmem>>, %arg12: memref<26x32xf32, #tpu.memory_space<vmem>>) attributes {dimension_semantics = [#tpu.dimension_semantics<arbitrary>], iteration_bounds = array<i64: 1>, scalar_prefetch = 0 : i64, scratch_operands = 0 : i64, tpu.core_type = #tpu.core_type<tc>, window_params = [{pipeline_mode = #tpu.pipeline_mode<synchronous>, transform_indices = @transform_0, window_bounds = array<i64: 26, 256>}, {pipeline_mode = #tpu.pipeline_mode<synchronous>, transform_indices = @transform_1, window_bounds = array<i64: 256, 288>}, {pipeline_mode = #tpu.pipeline_mode<synchronous>, transform_indices = @transform_2, window_bounds = array<i64: 1, 256>}, {pipeline_mode = #tpu.pipeline_mode<synchronous>, transform_indices = @transform_3, window_bounds = array<i64: 1, 256>}, {pipeline_mode = #tpu.pipeline_mode<synchronous>, transform_indices = @transform_4, window_bounds = array<i64: 256, 104>}, {pipeline_mode = #tpu.pipeline_mode<synchronous>, transform_indices = @transform_5, window_bounds = array<i64: 26, 104>}, {pipeline_mode = #tpu.pipeline_mode<synchronous>, transform_indices = @transform_6, window_bounds = array<i64: 26, 26>}, {pipeline_mode = #tpu.pipeline_mode<synchronous>, transform_indices = @transform_7, window_bounds = array<i64: 104, 32>}, {pipeline_mode = #tpu.pipeline_mode<synchronous>, transform_indices = @transform_8, window_bounds = array<i64: 1, 32>}, {pipeline_mode = #tpu.pipeline_mode<synchronous>, transform_indices = @transform_9, window_bounds = array<i64: 1, 32>}, {pipeline_mode = #tpu.pipeline_mode<synchronous>, transform_indices = @transform_10, window_bounds = array<i64: 1, 32>}, {pipeline_mode = #tpu.pipeline_mode<synchronous>, transform_indices = @transform_11, window_bounds = array<i64: 26, 32>}]} {
    %c0 = arith.constant 0 : index
    %c0_0 = arith.constant 0 : index
    %0 = vector.load %arg1[%c0, %c0_0] : memref<26x256xf32, #tpu.memory_space<vmem>>, vector<26x256xf32>
    %c0_1 = arith.constant 0 : index
    %c0_2 = arith.constant 0 : index
    %1 = vector.load %arg2[%c0_1, %c0_2] : memref<256x288xf32, #tpu.memory_space<vmem>>, vector<256x288xf32>
    %cst = arith.constant dense<0.000000e+00> : vector<26x288xf32>
    %2 = tpu.matmul %0, %1, %cst {dimension_numbers = #tpu.dot_dimension_numbers<[1], [0], [0], [1], [0, 0, 1, 1], [], []>} : vector<26x256xf32>, vector<256x288xf32>, vector<26x288xf32> -> vector<26x288xf32>
    %3 = vector.extract_strided_slice %2 {offsets = [0, 0], sizes = [26, 256], strides = [1, 1]} : vector<26x288xf32> to vector<26x256xf32>
    %4 = vector.extract_strided_slice %2 {offsets = [0, 256], sizes = [26, 32], strides = [1, 1]} : vector<26x288xf32> to vector<26x32xf32>
    %cst_3 = arith.constant dense<0.000000e+00> : vector<256xf32>
    %5 = vector.multi_reduction <add>, %3, %cst_3 [0] : vector<26x256xf32> to vector<256xf32>
    %6 = vector.shape_cast %5 : vector<256xf32> to vector<1x256xf32>
    %cst_4 = arith.constant 2.600000e+01 : f32
    %7 = vector.broadcast %cst_4 : f32 to vector<1x256xf32>
    %8 = arith.divf %6, %7 : vector<1x256xf32>
    %9 = vector.broadcast %8 : vector<1x256xf32> to vector<26x256xf32>
    %10 = arith.subf %3, %9 : vector<26x256xf32>
    %11 = arith.mulf %10, %10 : vector<26x256xf32>
    %cst_5 = arith.constant dense<0.000000e+00> : vector<256xf32>
    %12 = vector.multi_reduction <add>, %11, %cst_5 [0] : vector<26x256xf32> to vector<256xf32>
    %13 = vector.shape_cast %12 : vector<256xf32> to vector<1x256xf32>
    %cst_6 = arith.constant 2.600000e+01 : f32
    %14 = vector.broadcast %cst_6 : f32 to vector<1x256xf32>
    %15 = arith.divf %13, %14 : vector<1x256xf32>
    %cst_7 = arith.constant 9.99999974E-6 : f32
    %16 = vector.broadcast %cst_7 : f32 to vector<1x256xf32>
    %17 = arith.addf %15, %16 : vector<1x256xf32>
    %18 = math.rsqrt %17 : vector<1x256xf32>
    %19 = vector.broadcast %18 : vector<1x256xf32> to vector<26x256xf32>
    %20 = arith.mulf %10, %19 : vector<26x256xf32>
    %c0_8 = arith.constant 0 : index
    %c0_9 = arith.constant 0 : index
    %21 = vector.load %arg3[%c0_8, %c0_9] : memref<1x256xf32, #tpu.memory_space<vmem>>, vector<1x256xf32>
    %22 = vector.broadcast %21 : vector<1x256xf32> to vector<26x256xf32>
    %23 = arith.mulf %20, %22 : vector<26x256xf32>
    %c0_10 = arith.constant 0 : index
    %c0_11 = arith.constant 0 : index
    %24 = vector.load %arg4[%c0_10, %c0_11] : memref<1x256xf32, #tpu.memory_space<vmem>>, vector<1x256xf32>
    %25 = vector.broadcast %24 : vector<1x256xf32> to vector<26x256xf32>
    %26 = arith.addf %23, %25 : vector<26x256xf32>
    %cst_12 = arith.constant 0.000000e+00 : f32
    %27 = vector.broadcast %cst_12 : f32 to vector<26x256xf32>
    %28 = arith.maximumf %26, %27 : vector<26x256xf32>
    %c0_13 = arith.constant 0 : index
    %c0_14 = arith.constant 0 : index
    %29 = vector.load %arg5[%c0_13, %c0_14] : memref<256x104xf32, #tpu.memory_space<vmem>>, vector<256x104xf32>
    %cst_15 = arith.constant dense<0.000000e+00> : vector<26x104xf32>
    %30 = tpu.matmul %28, %29, %cst_15 {dimension_numbers = #tpu.dot_dimension_numbers<[1], [0], [0], [1], [0, 0, 1, 1], [], []>} : vector<26x256xf32>, vector<256x104xf32>, vector<26x104xf32> -> vector<26x104xf32>
    %c0_16 = arith.constant 0 : index
    %c0_17 = arith.constant 0 : index
    %31 = vector.load %arg6[%c0_16, %c0_17] : memref<26x104xf32, #tpu.memory_space<vmem>>, vector<26x104xf32>
    %32 = arith.mulf %30, %31 : vector<26x104xf32>
    %c0_18 = arith.constant 0 : index
    %c0_19 = arith.constant 0 : index
    %33 = vector.load %arg7[%c0_18, %c0_19] : memref<26x26xf32, #tpu.memory_space<vmem>>, vector<26x26xf32>
    %cst_20 = arith.constant dense<0.000000e+00> : vector<26x104xf32>
    %34 = tpu.matmul %33, %32, %cst_20 {dimension_numbers = #tpu.dot_dimension_numbers<[1], [0], [0], [1], [0, 0, 1, 1], [], []>} : vector<26x26xf32>, vector<26x104xf32>, vector<26x104xf32> -> vector<26x104xf32>
    %c0_21 = arith.constant 0 : index
    %c0_22 = arith.constant 0 : index
    %35 = vector.load %arg8[%c0_21, %c0_22] : memref<104x32xf32, #tpu.memory_space<vmem>>, vector<104x32xf32>
    %cst_23 = arith.constant dense<0.000000e+00> : vector<26x32xf32>
    %36 = tpu.matmul %34, %35, %cst_23 {dimension_numbers = #tpu.dot_dimension_numbers<[1], [0], [0], [1], [0, 0, 1, 1], [], []>} : vector<26x104xf32>, vector<104x32xf32>, vector<26x32xf32> -> vector<26x32xf32>
    %cst_24 = arith.constant dense<0.000000e+00> : vector<32xf32>
    %37 = vector.multi_reduction <add>, %36, %cst_24 [0] : vector<26x32xf32> to vector<32xf32>
    %38 = vector.shape_cast %37 : vector<32xf32> to vector<1x32xf32>
    %cst_25 = arith.constant 2.600000e+01 : f32
    %39 = vector.broadcast %cst_25 : f32 to vector<1x32xf32>
    %40 = arith.divf %38, %39 : vector<1x32xf32>
    %41 = vector.broadcast %40 : vector<1x32xf32> to vector<26x32xf32>
    %42 = arith.subf %36, %41 : vector<26x32xf32>
    %43 = arith.mulf %42, %42 : vector<26x32xf32>
    %cst_26 = arith.constant dense<0.000000e+00> : vector<32xf32>
    %44 = vector.multi_reduction <add>, %43, %cst_26 [0] : vector<26x32xf32> to vector<32xf32>
    %45 = vector.shape_cast %44 : vector<32xf32> to vector<1x32xf32>
    %cst_27 = arith.constant 2.600000e+01 : f32
    %46 = vector.broadcast %cst_27 : f32 to vector<1x32xf32>
    %47 = arith.divf %45, %46 : vector<1x32xf32>
    %cst_28 = arith.constant 9.99999974E-6 : f32
    %48 = vector.broadcast %cst_28 : f32 to vector<1x32xf32>
    %49 = arith.addf %47, %48 : vector<1x32xf32>
    %50 = math.rsqrt %49 : vector<1x32xf32>
    %51 = vector.broadcast %50 : vector<1x32xf32> to vector<26x32xf32>
    %52 = arith.mulf %42, %51 : vector<26x32xf32>
    %c0_29 = arith.constant 0 : index
    %c0_30 = arith.constant 0 : index
    %53 = vector.load %arg9[%c0_29, %c0_30] : memref<1x32xf32, #tpu.memory_space<vmem>>, vector<1x32xf32>
    %54 = vector.broadcast %53 : vector<1x32xf32> to vector<26x32xf32>
    %55 = arith.mulf %52, %54 : vector<26x32xf32>
    %c0_31 = arith.constant 0 : index
    %c0_32 = arith.constant 0 : index
    %56 = vector.load %arg10[%c0_31, %c0_32] : memref<1x32xf32, #tpu.memory_space<vmem>>, vector<1x32xf32>
    %57 = vector.broadcast %56 : vector<1x32xf32> to vector<26x32xf32>
    %58 = arith.addf %55, %57 : vector<26x32xf32>
    %59 = arith.addf %58, %4 : vector<26x32xf32>
    %c0_33 = arith.constant 0 : index
    %c0_34 = arith.constant 0 : index
    %60 = vector.load %arg11[%c0_33, %c0_34] : memref<1x32xf32, #tpu.memory_space<vmem>>, vector<1x32xf32>
    %61 = vector.broadcast %60 : vector<1x32xf32> to vector<26x32xf32>
    %62 = arith.addf %59, %61 : vector<26x32xf32>
    %cst_35 = arith.constant 0.000000e+00 : f32
    %63 = vector.broadcast %cst_35 : f32 to vector<26x32xf32>
    %64 = arith.maximumf %62, %63 : vector<26x32xf32>
    %c0_36 = arith.constant 0 : index
    %c0_37 = arith.constant 0 : index
    %65 = vector.load %arg12[%c0_36, %c0_37] : memref<26x32xf32, #tpu.memory_space<vmem>>, vector<26x32xf32>
    tpu.vector_store %arg12[%c0_36, %c0_37], %64 {strides = array<i32>} : memref<26x32xf32, #tpu.memory_space<vmem>>, vector<26x32xf32>,
    return
  }
  func.func @transform_0(%arg0: i32) -> (i32, i32) {
    %c0_i32 = arith.constant 0 : i32
    %c0_i32_0 = arith.constant 0 : i32
    %c0_i32_1 = arith.constant 0 : i32
    return %c0_i32, %c0_i32_0 : i32, i32
  }
  func.func @transform_1(%arg0: i32) -> (i32, i32) {
    %c0_i32 = arith.constant 0 : i32
    %c0_i32_0 = arith.constant 0 : i32
    %c0_i32_1 = arith.constant 0 : i32
    return %c0_i32, %c0_i32_0 : i32, i32
  }
  func.func @transform_2(%arg0: i32) -> (i32, i32) {
    %c0_i32 = arith.constant 0 : i32
    %c0_i32_0 = arith.constant 0 : i32
    %c0_i32_1 = arith.constant 0 : i32
    return %c0_i32, %c0_i32_0 : i32, i32
  }
  func.func @transform_3(%arg0: i32) -> (i32, i32) {
    %c0_i32 = arith.constant 0 : i32
    %c0_i32_0 = arith.constant 0 : i32
    %c0_i32_1 = arith.constant 0 : i32
    return %c0_i32, %c0_i32_0 : i32, i32
  }
  func.func @transform_4(%arg0: i32) -> (i32, i32) {
    %c0_i32 = arith.constant 0 : i32
    %c0_i32_0 = arith.constant 0 : i32
    %c0_i32_1 = arith.constant 0 : i32
    return %c0_i32, %c0_i32_0 : i32, i32
  }
  func.func @transform_5(%arg0: i32) -> (i32, i32) {
    %c0_i32 = arith.constant 0 : i32
    %c0_i32_0 = arith.constant 0 : i32
    %c0_i32_1 = arith.constant 0 : i32
    return %c0_i32, %c0_i32_0 : i32, i32
  }
  func.func @transform_6(%arg0: i32) -> (i32, i32) {
    %c0_i32 = arith.constant 0 : i32
    %c0_i32_0 = arith.constant 0 : i32
    %c0_i32_1 = arith.constant 0 : i32
    return %c0_i32, %c0_i32_0 : i32, i32
  }
  func.func @transform_7(%arg0: i32) -> (i32, i32) {
    %c0_i32 = arith.constant 0 : i32
    %c0_i32_0 = arith.constant 0 : i32
    %c0_i32_1 = arith.constant 0 : i32
    return %c0_i32, %c0_i32_0 : i32, i32
  }
  func.func @transform_8(%arg0: i32) -> (i32, i32) {
    %c0_i32 = arith.constant 0 : i32
    %c0_i32_0 = arith.constant 0 : i32
    %c0_i32_1 = arith.constant 0 : i32
    return %c0_i32, %c0_i32_0 : i32, i32
  }
  func.func @transform_9(%arg0: i32) -> (i32, i32) {
    %c0_i32 = arith.constant 0 : i32
    %c0_i32_0 = arith.constant 0 : i32
    %c0_i32_1 = arith.constant 0 : i32
    return %c0_i32, %c0_i32_0 : i32, i32
  }
  func.func @transform_10(%arg0: i32) -> (i32, i32) {
    %c0_i32 = arith.constant 0 : i32
    %c0_i32_0 = arith.constant 0 : i32
    %c0_i32_1 = arith.constant 0 : i32
    return %c0_i32, %c0_i32_0 : i32, i32
  }
  func.func @transform_11(%arg0: i32) -> (i32, i32) {
    %c0_i32 = arith.constant 0 : i32
    %c0_i32_0 = arith.constant 0 : i32
    %c0_i32_1 = arith.constant 0 : i32
    return %c0_i32, %c0_i32_0 : i32, i32
  }
}

</mosaic_0001>

<llo_original>
// kernel: tile.18
$region0: #{tile.18}
  #allocation0 [shape = 's32[1]{0}', space=sflag, size = 0x4, scoped, tag = 'scoped memory for tile.18']
  %s0 = inlined_call_operand.vmem [shape: f32[8], index: 0, kind: input, shape index: {}]
  %s1 = inlined_call_operand.vmem [shape: f32[4,8], index: 1, kind: output, shape index: {}]
  // Predicated region
  $region2: #{tile.18} parent=0 // pred_check
    _
  $region3: #{tile.18} parent=0 // pred_check_branch
    %3 = sbr.rel (0) target = $region5
  $region4: #{tile.18} parent=0 // pred_region
    _
  $region5: #{tile.18} parent=0 // pred_fallthru
    _
  %v4 = vld [vmem:[%s0] ss:$0 sm:$0xff]
  %5 = vst [vmem:[%s1] sm:$0xf] %v4

// kernel: tile.19
$region0: #{tile.19}
  %s0 = inlined_call_operand.vmem [shape: f32[4,8], index: 0, kind: input, shape index: {}]
  %s1 = inlined_call_operand.vmem [shape: f32[1,32], index: 1, kind: output, shape index: {}]
  $region1: #{tile.19} parent=0
    #allocation0 [shape = 'u8[4096]{0}', space=vmem, size = 0x1000, scoped, tag = 'scoped mem for output reshape']
    #allocation1 [shape = 'u8[4096]{0}', space=vmem, size = 0x1000, scoped, tag = 'scoped mem for input reshape']
    %s3 = sshll.u32 1, 4
    %s4 = ssub.s32 %s3, 1
    %v5 = vld [vmem:[%s0] sm:%s4]
    %6 = vst [vmem:[#allocation1] sm:%s4] %v5
    %v7 = vld [vmem:[#allocation1] sm:$0x1]
    %vm8 = vcmask 64512
    %9 = vst.msk [vmem:[#allocation0] sm:$0x1] %vm8, %v7
    %s10 = scalar_lea.vmem [#allocation1], 3
    %v11 = vld [vmem:[%s10] sm:$0x1]
    %12 = vrot.lane.b32.xlu0 %v11, 24
    %v13 = vpop.permute.xlu0 %12
    %vm14 = vcmask 261312
    %15 = vst.msk [vmem:[#allocation0] sm:$0x1] %vm14, %v13
    %s16 = scalar_lea.vmem [#allocation1], 2
    %v17 = vld [vmem:[%s16] sm:$0x1]
    %18 = vrot.lane.b32.xlu0 %v17, 16
    %v19 = vpop.permute.xlu0 %18
    %vm20 = vcmask 195712
    %21 = vst.msk [vmem:[#allocation0] sm:$0x1] %vm20, %v19
    %s22 = scalar_lea.vmem [#allocation1], 1
    %v23 = vld [vmem:[%s22] sm:$0x1]
    %24 = vrot.lane.b32.xlu0 %v23, 8
    %v25 = vpop.permute.xlu0 %24
    %vm26 = vcmask 130112
    %27 = vst.msk [vmem:[#allocation0] sm:$0x1] %vm26, %v25
    %s29 = sshll.u32 1, 1
    %s30 = ssub.s32 %s29, 1
    %v32 = vld [vmem:[#allocation0] sm:%s30]
    %s33 = sshll.u32 1, 1
    %s34 = ssub.s32 %s33, 1
    %35 = vst [vmem:[%s1] sm:%s34] %v32

// kernel: residual_forward.1
$region0: #{residual_forward.1}
  #allocation0 [shape = 'u32[]', space=smem, size = 0x4, offset = 0x4, fixed_abs, tag = 'smem constant byte address 0x4 - core index']
  #allocation1 [shape = 'u32[144,128]{1,0:T(1,128)}', space=vmem, size = 0x12000, scoped, tag = 'internal scratch']
  %s0 = inlined_call_operand.vmem [shape: f32[26,256], index: 0, kind: input, shape index: {}]
  %s1 = inlined_call_operand.vmem [shape: f32[256,288], index: 1, kind: input, shape index: {}]
  %s2 = inlined_call_operand.vmem [shape: f32[1,256], index: 2, kind: input, shape index: {}]
  %s3 = inlined_call_operand.vmem [shape: f32[1,256], index: 3, kind: input, shape index: {}]
  %s4 = inlined_call_operand.vmem [shape: f32[256,104], index: 4, kind: input, shape index: {}]
  %s5 = inlined_call_operand.vmem [shape: f32[26,104], index: 5, kind: input, shape index: {}]
  %s6 = inlined_call_operand.vmem [shape: f32[26,26], index: 6, kind: input, shape index: {}]
  %s7 = inlined_call_operand.vmem [shape: f32[104,32], index: 7, kind: input, shape index: {}]
  %s8 = inlined_call_operand.vmem [shape: f32[1,32], index: 8, kind: input, shape index: {}]
  %s9 = inlined_call_operand.vmem [shape: f32[1,32], index: 9, kind: input, shape index: {}]
  %s10 = inlined_call_operand.vmem [shape: f32[1,32], index: 10, kind: input, shape index: {}]
  %s11 = inlined_call_operand.vmem [shape: f32[26,32], index: 11, kind: output, shape index: {}]
  %s12 = sld [smem:[#allocation0]]
  $region54: #{residual_forward.1} parent=0
    _
  %s14 = ssub.s32 1, %s12
  %s15 = scalar_select 0, %s14, %s12
  // Predicated region
  $region2: #{residual_forward.1} parent=0 // pred_check
    _
  $region3: #{residual_forward.1} parent=0 // pred_check_branch
    %17 = sbr.rel (0) target = $region5
  $region4: #{residual_forward.1} parent=0 // pred_region
    _
  $region5: #{residual_forward.1} parent=0 // pred_fallthru
    _
  // Predicated region
  $region6: #{residual_forward.1} parent=0 // pred_check
    _
  $region7: #{residual_forward.1} parent=0 // pred_check_branch
    %19 = sbr.rel (0) target = $region9
  $region8: #{residual_forward.1} parent=0 // pred_region
    _
  $region9: #{residual_forward.1} parent=0 // pred_fallthru
    _
  // Predicated region
  $region10: #{residual_forward.1} parent=0 // pred_check
    _
  $region11: #{residual_forward.1} parent=0 // pred_check_branch
    %21 = sbr.rel (0) target = $region13
  $region12: #{residual_forward.1} parent=0 // pred_region
    _
  $region13: #{residual_forward.1} parent=0 // pred_fallthru
    _
  // Predicated region
  $region14: #{residual_forward.1} parent=0 // pred_check
    _
  $region15: #{residual_forward.1} parent=0 // pred_check_branch
    %23 = sbr.rel (0) target = $region17
  $region16: #{residual_forward.1} parent=0 // pred_region
    _
  $region17: #{residual_forward.1} parent=0 // pred_fallthru
    _
  // Predicated region
  $region18: #{residual_forward.1} parent=0 // pred_check
    _
  $region19: #{residual_forward.1} parent=0 // pred_check_branch
    %25 = sbr.rel (0) target = $region21
  $region20: #{residual_forward.1} parent=0 // pred_region
    _
  $region21: #{residual_forward.1} parent=0 // pred_fallthru
    _
  // Predicated region
  $region22: #{residual_forward.1} parent=0 // pred_check
    _
  $region23: #{residual_forward.1} parent=0 // pred_check_branch
    %27 = sbr.rel (0) target = $region25
  $region24: #{residual_forward.1} parent=0 // pred_region
    _
  $region25: #{residual_forward.1} parent=0 // pred_fallthru
    _
  // Predicated region
  $region26: #{residual_forward.1} parent=0 // pred_check
    _
  $region27: #{residual_forward.1} parent=0 // pred_check_branch
    %29 = sbr.rel (0) target = $region29
  $region28: #{residual_forward.1} parent=0 // pred_region
    _
  $region29: #{residual_forward.1} parent=0 // pred_fallthru
    _
  // Predicated region
  $region30: #{residual_forward.1} parent=0 // pred_check
    _
  $region31: #{residual_forward.1} parent=0 // pred_check_branch
    %31 = sbr.rel (0) target = $region33
  $region32: #{residual_forward.1} parent=0 // pred_region
    _
  $region33: #{residual_forward.1} parent=0 // pred_fallthru
    _
  // Predicated region
  $region34: #{residual_forward.1} parent=0 // pred_check
    _
  $region35: #{residual_forward.1} parent=0 // pred_check_branch
    %33 = sbr.rel (0) target = $region37
  $region36: #{residual_forward.1} parent=0 // pred_region
    _
  $region37: #{residual_forward.1} parent=0 // pred_fallthru
    _
  // Predicated region
  $region38: #{residual_forward.1} parent=0 // pred_check
    _
  $region39: #{residual_forward.1} parent=0 // pred_check_branch
    %35 = sbr.rel (0) target = $region41
  $region40: #{residual_forward.1} parent=0 // pred_region
    _
  $region41: #{residual_forward.1} parent=0 // pred_fallthru
    _
  // Predicated region
  $region42: #{residual_forward.1} parent=0 // pred_check
    _
  $region43: #{residual_forward.1} parent=0 // pred_check_branch
    %37 = sbr.rel (0) target = $region45
  $region44: #{residual_forward.1} parent=0 // pred_region
    _
  $region45: #{residual_forward.1} parent=0 // pred_fallthru
    _
  %v38 = vld [vmem:[%s0] sm:$0xff]
  %v39 = vld [vmem:[%s0 + $0x8] sm:$0xff]
  %v40 = vld [vmem:[%s0 + $0x10] sm:$0xff]
  %v41 = vld [vmem:[%s0 + $0x18] sm:$0xff]
  %v42 = vld [vmem:[%s0 + $0x20] sm:$0xff]
  %v43 = vld [vmem:[%s0 + $0x28] sm:$0xff]
  %v44 = vld [vmem:[%s0 + $0x30] sm:$0x3]
  %v45 = vld [vmem:[%s0 + $0x38] sm:$0x3]
  %v46 = vld [vmem:[%s1] sm:$0xff]
  %v47 = vld [vmem:[%s1 + $0x8] sm:$0xff]
  %v48 = vld [vmem:[%s1 + $0x10] sm:$0xff]
  %v49 = vld [vmem:[%s1 + $0x18] sm:$0xff]
  %v50 = vld [vmem:[%s1 + $0x20] sm:$0xff]
  %v51 = vld [vmem:[%s1 + $0x28] sm:$0xff]
  %v52 = vld [vmem:[%s1 + $0x30] sm:$0xff]
  %v53 = vld [vmem:[%s1 + $0x38] sm:$0xff]
  %v54 = vld [vmem:[%s1 + $0x40] sm:$0xff]
  %v55 = vld [vmem:[%s1 + $0x48] sm:$0xff]
  %v56 = vld [vmem:[%s1 + $0x50] sm:$0xff]
  %v57 = vld [vmem:[%s1 + $0x58] sm:$0xff]
  %v58 = vld [vmem:[%s1 + $0x60] sm:$0xff]
  %v59 = vld [vmem:[%s1 + $0x68] sm:$0xff]
  %v60 = vld [vmem:[%s1 + $0x70] sm:$0xff]
  %v61 = vld [vmem:[%s1 + $0x78] sm:$0xff]
  %v62 = vld [vmem:[%s1 + $0x80] sm:$0xff]
  %v63 = vld [vmem:[%s1 + $0x88] sm:$0xff]
  %v64 = vld [vmem:[%s1 + $0x90] sm:$0xff]
  %v65 = vld [vmem:[%s1 + $0x98] sm:$0xff]
  %v66 = vld [vmem:[%s1 + $0xa0] sm:$0xff]
  %v67 = vld [vmem:[%s1 + $0xa8] sm:$0xff]
  %v68 = vld [vmem:[%s1 + $0xb0] sm:$0xff]
  %v69 = vld [vmem:[%s1 + $0xb8] sm:$0xff]
  %v70 = vld [vmem:[%s1 + $0xc0] sm:$0xff]
  %v71 = vld [vmem:[%s1 + $0xc8] sm:$0xff]
  %v72 = vld [vmem:[%s1 + $0xd0] sm:$0xff]
  %v73 = vld [vmem:[%s1 + $0xd8] sm:$0xff]
  %v74 = vld [vmem:[%s1 + $0xe0] sm:$0xff]
  %v75 = vld [vmem:[%s1 + $0xe8] sm:$0xff]
  %v76 = vld [vmem:[%s1 + $0xf0] sm:$0xff]
  %v77 = vld [vmem:[%s1 + $0xf8] sm:$0xff]
  %v78 = vld [vmem:[%s1 + $0x100] sm:$0xff]
  %v79 = vld [vmem:[%s1 + $0x108] sm:$0xff]
  %v80 = vld [vmem:[%s1 + $0x110] sm:$0xff]
  %v81 = vld [vmem:[%s1 + $0x118] sm:$0xff]
  %v82 = vld [vmem:[%s1 + $0x120] sm:$0xff]
  %v83 = vld [vmem:[%s1 + $0x128] sm:$0xff]
  %v84 = vld [vmem:[%s1 + $0x130] sm:$0xff]
  %v85 = vld [vmem:[%s1 + $0x138] sm:$0xff]
  %v86 = vld [vmem:[%s1 + $0x140] sm:$0xff]
  %v87 = vld [vmem:[%s1 + $0x148] sm:$0xff]
  %v88 = vld [vmem:[%s1 + $0x150] sm:$0xff]
  %v89 = vld [vmem:[%s1 + $0x158] sm:$0xff]
  %v90 = vld [vmem:[%s1 + $0x160] sm:$0xff]
  %v91 = vld [vmem:[%s1 + $0x168] sm:$0xff]
  %v92 = vld [vmem:[%s1 + $0x170] sm:$0xff]
  %v93 = vld [vmem:[%s1 + $0x178] sm:$0xff]
  %v94 = vld [vmem:[%s1 + $0x180] sm:$0xff]
  %v95 = vld [vmem:[%s1 + $0x188] sm:$0xff]
  %v96 = vld [vmem:[%s1 + $0x190] sm:$0xff]
  %v97 = vld [vmem:[%s1 + $0x198] sm:$0xff]
  %v98 = vld [vmem:[%s1 + $0x1a0] sm:$0xff]
  %v99 = vld [vmem:[%s1 + $0x1a8] sm:$0xff]
  %v100 = vld [vmem:[%s1 + $0x1b0] sm:$0xff]
  %v101 = vld [vmem:[%s1 + $0x1b8] sm:$0xff]
  %v102 = vld [vmem:[%s1 + $0x1c0] sm:$0xff]
  %v103 = vld [vmem:[%s1 + $0x1c8] sm:$0xff]
  %v104 = vld [vmem:[%s1 + $0x1d0] sm:$0xff]
  %v105 = vld [vmem:[%s1 + $0x1d8] sm:$0xff]
  %v106 = vld [vmem:[%s1 + $0x1e0] sm:$0xff]
  %v107 = vld [vmem:[%s1 + $0x1e8] sm:$0xff]
  %v108 = vld [vmem:[%s1 + $0x1f0] sm:$0xff]
  %v109 = vld [vmem:[%s1 + $0x1f8] sm:$0xff]
  %v110 = vld [vmem:[%s1 + $0x200] sm:$0xff]
  %v111 = vld [vmem:[%s1 + $0x208] sm:$0xff]
  %v112 = vld [vmem:[%s1 + $0x210] sm:$0xff]
  %v113 = vld [vmem:[%s1 + $0x218] sm:$0xff]
  %v114 = vld [vmem:[%s1 + $0x220] sm:$0xff]
  %v115 = vld [vmem:[%s1 + $0x228] sm:$0xff]
  %v116 = vld [vmem:[%s1 + $0x230] sm:$0xff]
  %v117 = vld [vmem:[%s1 + $0x238] sm:$0xff]
  %v118 = vld [vmem:[%s1 + $0x240] sm:$0xff]
  %v119 = vld [vmem:[%s1 + $0x248] sm:$0xff]
  %v120 = vld [vmem:[%s1 + $0x250] sm:$0xff]
  %v121 = vld [vmem:[%s1 + $0x258] sm:$0xff]
  %v122 = vld [vmem:[%s1 + $0x260] sm:$0xff]
  %v123 = vld [vmem:[%s1 + $0x268] sm:$0xff]
  %v124 = vld [vmem:[%s1 + $0x270] sm:$0xff]
  %v125 = vld [vmem:[%s1 + $0x278] sm:$0xff]
  %v126 = vld [vmem:[%s1 + $0x280] sm:$0xff]
  %v127 = vld [vmem:[%s1 + $0x288] sm:$0xff]
  %v128 = vld [vmem:[%s1 + $0x290] sm:$0xff]
  %v129 = vld [vmem:[%s1 + $0x298] sm:$0xff]
  %v130 = vld [vmem:[%s1 + $0x2a0] sm:$0xff]
  %v131 = vld [vmem:[%s1 + $0x2a8] sm:$0xff]
  %v132 = vld [vmem:[%s1 + $0x2b0] sm:$0xff]
  %v133 = vld [vmem:[%s1 + $0x2b8] sm:$0xff]
  %v134 = vld [vmem:[%s1 + $0x2c0] sm:$0xff]
  %v135 = vld [vmem:[%s1 + $0x2c8] sm:$0xff]
  %v136 = vld [vmem:[%s1 + $0x2d0] sm:$0xff]
  %v137 = vld [vmem:[%s1 + $0x2d8] sm:$0xff]
  %v138 = vld [vmem:[%s1 + $0x2e0] sm:$0xff]
  %v139 = vld [vmem:[%s1 + $0x2e8] sm:$0xff]
  %v140 = vld [vmem:[%s1 + $0x2f0] sm:$0xff]
  %v141 = vld [vmem:[%s1 + $0x2f8] sm:$0xff]
  %142 = vmatprep.subr.mxu0 %v92
  %143 = vmatpush1.msra.mxu0 %v91
  %144 = vmatprep.subr.mxu0 %v89
  %145 = vmatpush1.msra.mxu0 %v88
  %146 = vmatprep.subr.mxu0 %v86
  %147 = vmatpush1.msra.mxu0 %v85
  %148 = vmatprep.subr.mxu0 %v83
  %149 = vmatpush1.msra.mxu0 %v82
  %150 = vmatprep.subr.mxu0 %v80
  %151 = vmatpush1.msra.mxu0 %v79
  %152 = vmatprep.subr.mxu0 %v77
  %153 = vmatpush1.msra.mxu0 %v76
  %154 = vmatprep.subr.mxu0 %v74
  %155 = vmatpush1.msra.mxu0 %v73
  %156 = vmatprep.subr.mxu0 %v71
  %157 = vmatpush1.msra.mxu0 %v70
  %158 = vmatprep.subr.mxu0 %v68
  %159 = vmatpush1.msra.mxu0 %v67
  %160 = vmatprep.subr.mxu0 %v65
  %161 = vmatpush1.msra.mxu0 %v64
  %162 = vmatprep.subr.mxu0 %v62
  %163 = vmatpush1.msra.mxu0 %v61
  %164 = vmatprep.subr.mxu0 %v59
  %165 = vmatpush1.msra.mxu0 %v58
  %166 = vmatprep.subr.mxu0 %v56
  %167 = vmatpush1.msra.mxu0 %v55
  %168 = vmatprep.subr.mxu0 %v53
  %169 = vmatpush1.msra.mxu0 %v52
  %170 = vmatprep.subr.mxu0 %v50
  %171 = vmatpush1.msra.mxu0 %v49
  %172 = vmatprep.subr.mxu0 %v47
  %173 = vmatpush1.msra.mxu0 %v46
  %174 = vmatprep.subr.mxu0 %v140
  %175 = vmatpush2.msra.mxu0 %v139
  %176 = vmatprep.subr.mxu0 %v137
  %177 = vmatpush2.msra.mxu0 %v136
  %178 = vmatprep.subr.mxu0 %v134
  %179 = vmatpush2.msra.mxu0 %v133
  %180 = vmatprep.subr.mxu0 %v131
  %181 = vmatpush2.msra.mxu0 %v130
  %182 = vmatprep.subr.mxu0 %v128
  %183 = vmatpush2.msra.mxu0 %v127
  %184 = vmatprep.subr.mxu0 %v125
  %185 = vmatpush2.msra.mxu0 %v124
  %186 = vmatprep.subr.mxu0 %v122
  %187 = vmatpush2.msra.mxu0 %v121
  %188 = vmatprep.subr.mxu0 %v119
  %189 = vmatpush2.msra.mxu0 %v118
  %190 = vmatprep.subr.mxu0 %v116
  %191 = vmatpush2.msra.mxu0 %v115
  %192 = vmatprep.subr.mxu0 %v113
  %193 = vmatpush2.msra.mxu0 %v112
  %194 = vmatprep.subr.mxu0 %v110
  %195 = vmatpush2.msra.mxu0 %v109
  %196 = vmatprep.subr.mxu0 %v107
  %197 = vmatpush2.msra.mxu0 %v106
  %198 = vmatprep.subr.mxu0 %v104
  %199 = vmatpush2.msra.mxu0 %v103
  %200 = vmatprep.subr.mxu0 %v101
  %201 = vmatpush2.msra.mxu0 %v100
  %202 = vmatprep.subr.mxu0 %v98
  %203 = vmatpush2.msra.mxu0 %v97
  %204 = vmatprep.subr.mxu0 %v95
  %205 = vmatpush2.msra.mxu0 %v94
  %206 = vmatprep.mubr.f32.mxu0 %v39
  %207 = vmatmul.mubr.f32.gmra.mxu0 %v38
  %v208 = vpop.f32.mrf.mxu0
  %v209 = vadd.f32 0.0, %v208
  %v210 = vpop.f32.mrf.mxu0
  %v211 = vadd.f32 0.0, %v210
  %212 = vmatprep.mubr.f32.mxu0 %v41
  %213 = vmatmul.mubr.f32.gmra.mxu0 %v40
  %v214 = vpop.f32.mrf.mxu0
  %v215 = vadd.f32 0.0, %v214
  %v216 = vpop.f32.mrf.mxu0
  %v217 = vadd.f32 0.0, %v216
  %218 = vmatprep.mubr.f32.mxu0 %v43
  %219 = vmatmul.mubr.f32.gmra.mxu0 %v42
  %v220 = vpop.f32.mrf.mxu0
  %v221 = vadd.f32 0.0, %v220
  %v222 = vpop.f32.mrf.mxu0
  %v223 = vadd.f32 0.0, %v222
  %224 = vmatprep.mubr.f32.mxu0 %v45
  %225 = vmatmul.mubr.f32.gmra.mxu0 %v44
  %v226 = vpop.f32.mrf.mxu0
  %v227 = vadd.f32 0.0, %v226
  %v228 = vpop.f32.mrf.mxu0
  %v229 = vadd.f32 0.0, %v228
  %230 = vdwg.mxu0
  %231 = vmatprep.subr.mxu0 0.0
  %232 = vmatpush1.msra.mxu0 %v93
  %233 = vmatprep.subr.mxu0 0.0
  %234 = vmatpush1.msra.mxu0 %v90
  %235 = vmatprep.subr.mxu0 0.0
  %236 = vmatpush1.msra.mxu0 %v87
  %237 = vmatprep.subr.mxu0 0.0
  %238 = vmatpush1.msra.mxu0 %v84
  %239 = vmatprep.subr.mxu0 0.0
  %240 = vmatpush1.msra.mxu0 %v81
  %241 = vmatprep.subr.mxu0 0.0
  %242 = vmatpush1.msra.mxu0 %v78
  %243 = vmatprep.subr.mxu0 0.0
  %244 = vmatpush1.msra.mxu0 %v75
  %245 = vmatprep.subr.mxu0 0.0
  %246 = vmatpush1.msra.mxu0 %v72
  %247 = vmatprep.subr.mxu0 0.0
  %248 = vmatpush1.msra.mxu0 %v69
  %249 = vmatprep.subr.mxu0 0.0
  %250 = vmatpush1.msra.mxu0 %v66
  %251 = vmatprep.subr.mxu0 0.0
  %252 = vmatpush1.msra.mxu0 %v63
  %253 = vmatprep.subr.mxu0 0.0
  %254 = vmatpush1.msra.mxu0 %v60
  %255 = vmatprep.subr.mxu0 0.0
  %256 = vmatpush1.msra.mxu0 %v57
  %257 = vmatprep.subr.mxu0 0.0
  %258 = vmatpush1.msra.mxu0 %v54
  %259 = vmatprep.subr.mxu0 0.0
  %260 = vmatpush1.msra.mxu0 %v51
  %261 = vmatprep.subr.mxu0 0.0
  %262 = vmatpush1.msra.mxu0 %v48
  %263 = vmatprep.subr.mxu0 0.0
  %264 = vmatpush2.msra.mxu0 %v141
  %265 = vmatprep.subr.mxu0 0.0
  %266 = vmatpush2.msra.mxu0 %v138
  %267 = vmatprep.subr.mxu0 0.0
  %268 = vmatpush2.msra.mxu0 %v135
  %269 = vmatprep.subr.mxu0 0.0
  %270 = vmatpush2.msra.mxu0 %v132
  %271 = vmatprep.subr.mxu0 0.0
  %272 = vmatpush2.msra.mxu0 %v129
  %273 = vmatprep.subr.mxu0 0.0
  %274 = vmatpush2.msra.mxu0 %v126
  %275 = vmatprep.subr.mxu0 0.0
  %276 = vmatpush2.msra.mxu0 %v123
  %277 = vmatprep.subr.mxu0 0.0
  %278 = vmatpush2.msra.mxu0 %v120
  %279 = vmatprep.subr.mxu0 0.0
  %280 = vmatpush2.msra.mxu0 %v117
  %281 = vmatprep.subr.mxu0 0.0
  %282 = vmatpush2.msra.mxu0 %v114
  %283 = vmatprep.subr.mxu0 0.0
  %284 = vmatpush2.msra.mxu0 %v111
  %285 = vmatprep.subr.mxu0 0.0
  %286 = vmatpush2.msra.mxu0 %v108
  %287 = vmatprep.subr.mxu0 0.0
  %288 = vmatpush2.msra.mxu0 %v105
  %289 = vmatprep.subr.mxu0 0.0
  %290 = vmatpush2.msra.mxu0 %v102
  %291 = vmatprep.subr.mxu0 0.0
  %292 = vmatpush2.msra.mxu0 %v99
  %293 = vmatprep.subr.mxu0 0.0
  %294 = vmatpush2.msra.mxu0 %v96
  %295 = vmatprep.mubr.f32.mxu0 %v39
  %296 = vmatmul.mubr.f32.gmra.mxu0 %v38
  %v297 = vpop.f32.mrf.mxu0
  %v298 = vadd.f32 0.0, %v297
  %v299 = vpop.f32.mrf.mxu0
  %300 = vmatprep.mubr.f32.mxu0 %v41
  %301 = vmatmul.mubr.f32.gmra.mxu0 %v40
  %v302 = vpop.f32.mrf.mxu0
  %v303 = vadd.f32 0.0, %v302
  %v304 = vpop.f32.mrf.mxu0
  %305 = vmatprep.mubr.f32.mxu0 %v43
  %306 = vmatmul.mubr.f32.gmra.mxu0 %v42
  %v307 = vpop.f32.mrf.mxu0
  %v308 = vadd.f32 0.0, %v307
  %v309 = vpop.f32.mrf.mxu0
  %310 = vmatprep.mubr.f32.mxu0 %v45
  %311 = vmatmul.mubr.f32.gmra.mxu0 %v44
  %v312 = vpop.f32.mrf.mxu0
  %v313 = vadd.f32 0.0, %v312
  %v314 = vpop.f32.mrf.mxu0
  %315 = vdwg.mxu0
  %v316 = vadd.f32 %v209, %v215
  %v317 = vadd.f32 %v316, %v221
  %vm318 = vcmask 1041408
  %v319 = vsel %vm318, %v227, 0.0
  %v320 = vadd.f32 %v317, %v319
  %v321 = vrot.slane %v320, 4
  %v322 = vadd.f32 %v320, %v321
  %v323 = vrot.slane %v322, 2
  %v324 = vadd.f32 %v322, %v323
  %v325 = vrot.slane %v324, 1
  %v326 = vadd.f32 %v324, %v325
  %v327 = vadd.f32 %v211, %v217
  %v328 = vadd.f32 %v327, %v223
  %v329 = vsel %vm318, %v229, 0.0
  %v330 = vadd.f32 %v328, %v329
  %v331 = vrot.slane %v330, 4
  %v332 = vadd.f32 %v330, %v331
  %v333 = vrot.slane %v332, 2
  %v334 = vadd.f32 %v332, %v333
  %v335 = vrot.slane %v334, 1
  %v336 = vadd.f32 %v334, %v335
  %v337 = vrcp.pop 26.0
  %v338 = vmul.f32 %v326, %v337
  %v339 = vmul.f32 %v336, %v337
  %v340 = vsub.f32 %v209, %v338
  %v341 = vsub.f32 %v211, %v339
  %v342 = vsub.f32 %v215, %v338
  %v343 = vsub.f32 %v217, %v339
  %v344 = vsub.f32 %v221, %v338
  %v345 = vsub.f32 %v223, %v339
  %v346 = vsub.f32 %v227, %v338
  %v347 = vsub.f32 %v229, %v339
  %v348 = vmul.f32 %v340, %v340
  %v349 = vmul.f32 %v341, %v341
  %v350 = vmul.f32 %v342, %v342
  %v351 = vmul.f32 %v343, %v343
  %v352 = vmul.f32 %v344, %v344
  %v353 = vmul.f32 %v345, %v345
  %v354 = vmul.f32 %v346, %v346
  %v355 = vmul.f32 %v347, %v347
  %v356 = vadd.f32 %v348, %v350
  %v357 = vadd.f32 %v356, %v352
  %v358 = vsel %vm318, %v354, 0.0
  %v359 = vadd.f32 %v357, %v358
  %v360 = vrot.slane %v359, 4
  %v361 = vadd.f32 %v359, %v360
  %v362 = vrot.slane %v361, 2
  %v363 = vadd.f32 %v361, %v362
  %v364 = vrot.slane %v363, 1
  %v365 = vadd.f32 %v363, %v364
  %v366 = vadd.f32 %v349, %v351
  %v367 = vadd.f32 %v366, %v353
  %v368 = vsel %vm318, %v355, 0.0
  %v369 = vadd.f32 %v367, %v368
  %v370 = vrot.slane %v369, 4
  %v371 = vadd.f32 %v369, %v370
  %v372 = vrot.slane %v371, 2
  %v373 = vadd.f32 %v371, %v372
  %v374 = vrot.slane %v373, 1
  %v375 = vadd.f32 %v373, %v374
  %v376 = vmul.f32 %v365, %v337
  %v377 = vmul.f32 %v375, %v337
  %v378 = vadd.f32 %v376, 1e-05
  %v379 = vadd.f32 %v377, 1e-05
  %v380 = vrsqrt.pop %v378
  %v381 = vrsqrt.pop %v379
  %v382 = vmul.f32 %v340, %v380
  %v383 = vmul.f32 %v341, %v381
  %v384 = vmul.f32 %v342, %v380
  %v385 = vmul.f32 %v343, %v381
  %v386 = vmul.f32 %v344, %v380
  %v387 = vmul.f32 %v345, %v381
  %v388 = vmul.f32 %v346, %v380
  %v389 = vmul.f32 %v347, %v381
  %v390 = vld [vmem:[%s2] sm:$0x3]
  %v392 = vlaneseq
  %v393 = vshrl.u32 %v392, 7
  %v394 = vsub.s32 0, %v393
  %v395 = vrot.slane %v390, %v394
  %v396 = vlaneseq
  %v397 = vshrl.u32 %v396, 7
  %v398 = vsub.s32 1, %v397
  %v399 = vrot.slane %v390, %v398
  %v402 = vmul.f32 %v382, %v395
  %v403 = vmul.f32 %v383, %v399
  %v404 = vmul.f32 %v384, %v395
  %v405 = vmul.f32 %v385, %v399
  %v406 = vmul.f32 %v386, %v395
  %v407 = vmul.f32 %v387, %v399
  %v408 = vmul.f32 %v388, %v395
  %v409 = vmul.f32 %v389, %v399
  %v410 = vld [vmem:[%s3] sm:$0x3]
  %v412 = vlaneseq
  %v413 = vshrl.u32 %v412, 7
  %v414 = vsub.s32 0, %v413
  %v415 = vrot.slane %v410, %v414
  %v416 = vlaneseq
  %v417 = vshrl.u32 %v416, 7
  %v418 = vsub.s32 1, %v417
  %v419 = vrot.slane %v410, %v418
  %v422 = vadd.f32 %v402, %v415
  %v423 = vadd.f32 %v403, %v419
  %v424 = vadd.f32 %v404, %v415
  %v425 = vadd.f32 %v405, %v419
  %v426 = vadd.f32 %v406, %v415
  %v427 = vadd.f32 %v407, %v419
  %v428 = vadd.f32 %v408, %v415
  %v429 = vadd.f32 %v409, %v419
  %v430 = vmax.f32 %v422, 0.0
  %v431 = vmax.f32 %v423, 0.0
  %v432 = vmax.f32 %v424, 0.0
  %v433 = vmax.f32 %v425, 0.0
  %v434 = vmax.f32 %v426, 0.0
  %v435 = vmax.f32 %v427, 0.0
  %v436 = vmax.f32 %v428, 0.0
  %v437 = vmax.f32 %v429, 0.0
  %v438 = vld [vmem:[%s4] sm:$0xff]
  %v439 = vld [vmem:[%s4 + $0x8] sm:$0xff]
  %v440 = vld [vmem:[%s4 + $0x10] sm:$0xff]
  %v441 = vld [vmem:[%s4 + $0x18] sm:$0xff]
  %v442 = vld [vmem:[%s4 + $0x20] sm:$0xff]
  %v443 = vld [vmem:[%s4 + $0x28] sm:$0xff]
  %v444 = vld [vmem:[%s4 + $0x30] sm:$0xff]
  %v445 = vld [vmem:[%s4 + $0x38] sm:$0xff]
  %v446 = vld [vmem:[%s4 + $0x40] sm:$0xff]
  %v447 = vld [vmem:[%s4 + $0x48] sm:$0xff]
  %v448 = vld [vmem:[%s4 + $0x50] sm:$0xff]
  %v449 = vld [vmem:[%s4 + $0x58] sm:$0xff]
  %v450 = vld [vmem:[%s4 + $0x60] sm:$0xff]
  %v451 = vld [vmem:[%s4 + $0x68] sm:$0xff]
  %v452 = vld [vmem:[%s4 + $0x70] sm:$0xff]
  %v453 = vld [vmem:[%s4 + $0x78] sm:$0xff]
  %v454 = vld [vmem:[%s4 + $0x80] sm:$0xff]
  %v455 = vld [vmem:[%s4 + $0x88] sm:$0xff]
  %v456 = vld [vmem:[%s4 + $0x90] sm:$0xff]
  %v457 = vld [vmem:[%s4 + $0x98] sm:$0xff]
  %v458 = vld [vmem:[%s4 + $0xa0] sm:$0xff]
  %v459 = vld [vmem:[%s4 + $0xa8] sm:$0xff]
  %v460 = vld [vmem:[%s4 + $0xb0] sm:$0xff]
  %v461 = vld [vmem:[%s4 + $0xb8] sm:$0xff]
  %v462 = vld [vmem:[%s4 + $0xc0] sm:$0xff]
  %v463 = vld [vmem:[%s4 + $0xc8] sm:$0xff]
  %v464 = vld [vmem:[%s4 + $0xd0] sm:$0xff]
  %v465 = vld [vmem:[%s4 + $0xd8] sm:$0xff]
  %v466 = vld [vmem:[%s4 + $0xe0] sm:$0xff]
  %v467 = vld [vmem:[%s4 + $0xe8] sm:$0xff]
  %v468 = vld [vmem:[%s4 + $0xf0] sm:$0xff]
  %v469 = vld [vmem:[%s4 + $0xf8] sm:$0xff]
  %470 = vmatprep.subr.mxu0 0.0
  %471 = vmatpush1.msra.mxu0 %v453
  %472 = vmatprep.subr.mxu0 0.0
  %473 = vmatpush1.msra.mxu0 %v452
  %474 = vmatprep.subr.mxu0 0.0
  %475 = vmatpush1.msra.mxu0 %v451
  %476 = vmatprep.subr.mxu0 0.0
  %477 = vmatpush1.msra.mxu0 %v450
  %478 = vmatprep.subr.mxu0 0.0
  %479 = vmatpush1.msra.mxu0 %v449
  %480 = vmatprep.subr.mxu0 0.0
  %481 = vmatpush1.msra.mxu0 %v448
  %482 = vmatprep.subr.mxu0 0.0
  %483 = vmatpush1.msra.mxu0 %v447
  %484 = vmatprep.subr.mxu0 0.0
  %485 = vmatpush1.msra.mxu0 %v446
  %486 = vmatprep.subr.mxu0 0.0
  %487 = vmatpush1.msra.mxu0 %v445
  %488 = vmatprep.subr.mxu0 0.0
  %489 = vmatpush1.msra.mxu0 %v444
  %490 = vmatprep.subr.mxu0 0.0
  %491 = vmatpush1.msra.mxu0 %v443
  %492 = vmatprep.subr.mxu0 0.0
  %493 = vmatpush1.msra.mxu0 %v442
  %494 = vmatprep.subr.mxu0 0.0
  %495 = vmatpush1.msra.mxu0 %v441
  %496 = vmatprep.subr.mxu0 0.0
  %497 = vmatpush1.msra.mxu0 %v440
  %498 = vmatprep.subr.mxu0 0.0
  %499 = vmatpush1.msra.mxu0 %v439
  %500 = vmatprep.subr.mxu0 0.0
  %501 = vmatpush1.msra.mxu0 %v438
  %502 = vmatprep.subr.mxu0 0.0
  %503 = vmatpush2.msra.mxu0 %v469
  %504 = vmatprep.subr.mxu0 0.0
  %505 = vmatpush2.msra.mxu0 %v468
  %506 = vmatprep.subr.mxu0 0.0
  %507 = vmatpush2.msra.mxu0 %v467
  %508 = vmatprep.subr.mxu0 0.0
  %509 = vmatpush2.msra.mxu0 %v466
  %510 = vmatprep.subr.mxu0 0.0
  %511 = vmatpush2.msra.mxu0 %v465
  %512 = vmatprep.subr.mxu0 0.0
  %513 = vmatpush2.msra.mxu0 %v464
  %514 = vmatprep.subr.mxu0 0.0
  %515 = vmatpush2.msra.mxu0 %v463
  %516 = vmatprep.subr.mxu0 0.0
  %517 = vmatpush2.msra.mxu0 %v462
  %518 = vmatprep.subr.mxu0 0.0
  %519 = vmatpush2.msra.mxu0 %v461
  %520 = vmatprep.subr.mxu0 0.0
  %521 = vmatpush2.msra.mxu0 %v460
  %522 = vmatprep.subr.mxu0 0.0
  %523 = vmatpush2.msra.mxu0 %v459
  %524 = vmatprep.subr.mxu0 0.0
  %525 = vmatpush2.msra.mxu0 %v458
  %526 = vmatprep.subr.mxu0 0.0
  %527 = vmatpush2.msra.mxu0 %v457
  %528 = vmatprep.subr.mxu0 0.0
  %529 = vmatpush2.msra.mxu0 %v456
  %530 = vmatprep.subr.mxu0 0.0
  %531 = vmatpush2.msra.mxu0 %v455
  %532 = vmatprep.subr.mxu0 0.0
  %533 = vmatpush2.msra.mxu0 %v454
  %534 = vmatprep.mubr.f32.mxu0 %v431
  %535 = vmatmul.mubr.f32.gmra.mxu0 %v430
  %v536 = vpop.f32.mrf.mxu0
  %v537 = vadd.f32 0.0, %v536
  %v538 = vpop.f32.mrf.mxu0
  %539 = vmatprep.mubr.f32.mxu0 %v433
  %540 = vmatmul.mubr.f32.gmra.mxu0 %v432
  %v541 = vpop.f32.mrf.mxu0
  %v542 = vadd.f32 0.0, %v541
  %v543 = vpop.f32.mrf.mxu0
  %544 = vmatprep.mubr.f32.mxu0 %v435
  %545 = vmatmul.mubr.f32.gmra.mxu0 %v434
  %v546 = vpop.f32.mrf.mxu0
  %v547 = vadd.f32 0.0, %v546
  %v548 = vpop.f32.mrf.mxu0
  %549 = vmatprep.mubr.f32.mxu0 %v437
  %550 = vmatmul.mubr.f32.gmra.mxu0 %v436
  %v551 = vpop.f32.mrf.mxu0
  %v552 = vadd.f32 0.0, %v551
  %v553 = vpop.f32.mrf.mxu0
  %554 = vdwg.mxu0
  %v555 = vld [vmem:[%s5] sm:$0xff]
  %v556 = vld [vmem:[%s5 + $0x8] sm:$0xff]
  %v557 = vld [vmem:[%s5 + $0x10] sm:$0xff]
  %v558 = vld [vmem:[%s5 + $0x18] sm:$0x3]
  %v559 = vmul.f32 %v537, %v555
  %v560 = vmul.f32 %v542, %v556
  %v561 = vmul.f32 %v547, %v557
  %v562 = vmul.f32 %v552, %v558
  %v563 = vld [vmem:[%s6] sm:$0xff]
  %v564 = vld [vmem:[%s6 + $0x8] sm:$0xff]
  %v565 = vld [vmem:[%s6 + $0x10] sm:$0xff]
  %v566 = vld [vmem:[%s6 + $0x18] sm:$0x3]
  %vm567 = vcmask 211968
  %v569 = vsel %vm567, %v563, 0
  %v572 = vsel %vm567, %v564, 0
  %v575 = vsel %vm567, %v565, 0
  %v578 = vsel %vm567, %v566, 0
  %v581 = vsel %vm318, %v562, 0
  %583 = vmatprep.subr.mxu0 0.0
  %584 = vmatpush1.msra.mxu0 0.0
  %585 = vmatprep.subr.mxu0 0.0
  %586 = vmatpush1.msra.mxu0 0.0
  %587 = vmatprep.subr.mxu0 0.0
  %588 = vmatpush1.msra.mxu0 0.0
  %589 = vmatprep.subr.mxu0 0.0
  %590 = vmatpush1.msra.mxu0 0.0
  %591 = vmatprep.subr.mxu0 0.0
  %592 = vmatpush1.msra.mxu0 0.0
  %593 = vmatprep.subr.mxu0 0.0
  %594 = vmatpush1.msra.mxu0 0.0
  %595 = vmatprep.subr.mxu0 0.0
  %596 = vmatpush1.msra.mxu0 0.0
  %597 = vmatprep.subr.mxu0 0.0
  %598 = vmatpush1.msra.mxu0 0.0
  %599 = vmatprep.subr.mxu0 0.0
  %600 = vmatpush1.msra.mxu0 0.0
  %601 = vmatprep.subr.mxu0 0.0
  %602 = vmatpush1.msra.mxu0 0.0
  %603 = vmatprep.subr.mxu0 0.0
  %604 = vmatpush1.msra.mxu0 0.0
  %605 = vmatprep.subr.mxu0 0.0
  %606 = vmatpush1.msra.mxu0 0.0
  %607 = vmatprep.subr.mxu0 0.0
  %608 = vmatpush1.msra.mxu0 %v581
  %609 = vmatprep.subr.mxu0 0.0
  %610 = vmatpush1.msra.mxu0 %v561
  %611 = vmatprep.subr.mxu0 0.0
  %612 = vmatpush1.msra.mxu0 %v560
  %613 = vmatprep.subr.mxu0 0.0
  %614 = vmatpush1.msra.mxu0 %v559
  %615 = vmatprep.subr.mxu0 0.0
  %616 = vmatpush2.msra.mxu0 0.0
  %617 = vmatprep.subr.mxu0 0.0
  %618 = vmatpush2.msra.mxu0 0.0
  %619 = vmatprep.subr.mxu0 0.0
  %620 = vmatpush2.msra.mxu0 0.0
  %621 = vmatprep.subr.mxu0 0.0
  %622 = vmatpush2.msra.mxu0 0.0
  %623 = vmatprep.subr.mxu0 0.0
  %624 = vmatpush2.msra.mxu0 0.0
  %625 = vmatprep.subr.mxu0 0.0
  %626 = vmatpush2.msra.mxu0 0.0
  %627 = vmatprep.subr.mxu0 0.0
  %628 = vmatpush2.msra.mxu0 0.0
  %629 = vmatprep.subr.mxu0 0.0
  %630 = vmatpush2.msra.mxu0 0.0
  %631 = vmatprep.subr.mxu0 0.0
  %632 = vmatpush2.msra.mxu0 0.0
  %633 = vmatprep.subr.mxu0 0.0
  %634 = vmatpush2.msra.mxu0 0.0
  %635 = vmatprep.subr.mxu0 0.0
  %636 = vmatpush2.msra.mxu0 0.0
  %637 = vmatprep.subr.mxu0 0.0
  %638 = vmatpush2.msra.mxu0 0.0
  %639 = vmatprep.subr.mxu0 0.0
  %640 = vmatpush2.msra.mxu0 0.0
  %641 = vmatprep.subr.mxu0 0.0
  %642 = vmatpush2.msra.mxu0 0.0
  %643 = vmatprep.subr.mxu0 0.0
  %644 = vmatpush2.msra.mxu0 0.0
  %645 = vmatprep.subr.mxu0 0.0
  %646 = vmatpush2.msra.mxu0 0.0
  %647 = vmatprep.mubr.f32.mxu0 0.0
  %648 = vmatmul.mubr.f32.gmra.mxu0 %v569
  %v649 = vpop.f32.mrf.mxu0
  %v650 = vadd.f32 0.0, %v649
  %v651 = vpop.f32.mrf.mxu0
  %652 = vmatprep.mubr.f32.mxu0 0.0
  %653 = vmatmul.mubr.f32.gmra.mxu0 %v572
  %v654 = vpop.f32.mrf.mxu0
  %v655 = vadd.f32 0.0, %v654
  %v656 = vpop.f32.mrf.mxu0
  %657 = vmatprep.mubr.f32.mxu0 0.0
  %658 = vmatmul.mubr.f32.gmra.mxu0 %v575
  %v659 = vpop.f32.mrf.mxu0
  %v660 = vadd.f32 0.0, %v659
  %v661 = vpop.f32.mrf.mxu0
  %662 = vmatprep.mubr.f32.mxu0 0.0
  %663 = vmatmul.mubr.f32.gmra.mxu0 %v578
  %v664 = vpop.f32.mrf.mxu0
  %v665 = vadd.f32 0.0, %v664
  %v666 = vpop.f32.mrf.mxu0
  %667 = vdwg.mxu0
  %v668 = vld [vmem:[%s7] sm:$0xff]
  %v669 = vld [vmem:[%s7 + $0x8] sm:$0xff]
  %v670 = vld [vmem:[%s7 + $0x10] sm:$0xff]
  %v671 = vld [vmem:[%s7 + $0x18] sm:$0xff]
  %v672 = vld [vmem:[%s7 + $0x20] sm:$0xff]
  %v673 = vld [vmem:[%s7 + $0x28] sm:$0xff]
  %v674 = vld [vmem:[%s7 + $0x30] sm:$0xff]
  %v675 = vld [vmem:[%s7 + $0x38] sm:$0xff]
  %v676 = vld [vmem:[%s7 + $0x40] sm:$0xff]
  %v677 = vld [vmem:[%s7 + $0x48] sm:$0xff]
  %v678 = vld [vmem:[%s7 + $0x50] sm:$0xff]
  %v679 = vld [vmem:[%s7 + $0x58] sm:$0xff]
  %v680 = vld [vmem:[%s7 + $0x60] sm:$0xff]
  %vm681 = vcmask 850944
  %v683 = vsel %vm681, %v650, 0
  %v686 = vsel %vm681, %v655, 0
  %v689 = vsel %vm681, %v660, 0
  %v692 = vsel %vm681, %v665, 0
  %694 = vmatprep.subr.mxu0 0.0
  %695 = vmatpush1.msra.mxu0 0.0
  %696 = vmatprep.subr.mxu0 0.0
  %697 = vmatpush1.msra.mxu0 0.0
  %698 = vmatprep.subr.mxu0 0.0
  %699 = vmatpush1.msra.mxu0 0.0
  %700 = vmatprep.subr.mxu0 0.0
  %701 = vmatpush1.msra.mxu0 %v680
  %702 = vmatprep.subr.mxu0 0.0
  %703 = vmatpush1.msra.mxu0 %v679
  %704 = vmatprep.subr.mxu0 0.0
  %705 = vmatpush1.msra.mxu0 %v678
  %706 = vmatprep.subr.mxu0 0.0
  %707 = vmatpush1.msra.mxu0 %v677
  %708 = vmatprep.subr.mxu0 0.0
  %709 = vmatpush1.msra.mxu0 %v676
  %710 = vmatprep.subr.mxu0 0.0
  %711 = vmatpush1.msra.mxu0 %v675
  %712 = vmatprep.subr.mxu0 0.0
  %713 = vmatpush1.msra.mxu0 %v674
  %714 = vmatprep.subr.mxu0 0.0
  %715 = vmatpush1.msra.mxu0 %v673
  %716 = vmatprep.subr.mxu0 0.0
  %717 = vmatpush1.msra.mxu0 %v672
  %718 = vmatprep.subr.mxu0 0.0
  %719 = vmatpush1.msra.mxu0 %v671
  %720 = vmatprep.subr.mxu0 0.0
  %721 = vmatpush1.msra.mxu0 %v670
  %722 = vmatprep.subr.mxu0 0.0
  %723 = vmatpush1.msra.mxu0 %v669
  %724 = vmatprep.subr.mxu0 0.0
  %725 = vmatpush1.msra.mxu0 %v668
  %726 = vmatprep.subr.mxu0 0.0
  %727 = vmatpush2.msra.mxu0 0.0
  %728 = vmatprep.subr.mxu0 0.0
  %729 = vmatpush2.msra.mxu0 0.0
  %730 = vmatprep.subr.mxu0 0.0
  %731 = vmatpush2.msra.mxu0 0.0
  %732 = vmatprep.subr.mxu0 0.0
  %733 = vmatpush2.msra.mxu0 0.0
  %734 = vmatprep.subr.mxu0 0.0
  %735 = vmatpush2.msra.mxu0 0.0
  %736 = vmatprep.subr.mxu0 0.0
  %737 = vmatpush2.msra.mxu0 0.0
  %738 = vmatprep.subr.mxu0 0.0
  %739 = vmatpush2.msra.mxu0 0.0
  %740 = vmatprep.subr.mxu0 0.0
  %741 = vmatpush2.msra.mxu0 0.0
  %742 = vmatprep.subr.mxu0 0.0
  %743 = vmatpush2.msra.mxu0 0.0
  %744 = vmatprep.subr.mxu0 0.0
  %745 = vmatpush2.msra.mxu0 0.0
  %746 = vmatprep.subr.mxu0 0.0
  %747 = vmatpush2.msra.mxu0 0.0
  %748 = vmatprep.subr.mxu0 0.0
  %749 = vmatpush2.msra.mxu0 0.0
  %750 = vmatprep.subr.mxu0 0.0
  %751 = vmatpush2.msra.mxu0 0.0
  %752 = vmatprep.subr.mxu0 0.0
  %753 = vmatpush2.msra.mxu0 0.0
  %754 = vmatprep.subr.mxu0 0.0
  %755 = vmatpush2.msra.mxu0 0.0
  %756 = vmatprep.subr.mxu0 0.0
  %757 = vmatpush2.msra.mxu0 0.0
  %758 = vmatprep.mubr.f32.mxu0 0.0
  %759 = vmatmul.mubr.f32.gmra.mxu0 %v683
  %v760 = vpop.f32.mrf.mxu0
  %v761 = vadd.f32 0.0, %v760
  %v762 = vpop.f32.mrf.mxu0
  %763 = vmatprep.mubr.f32.mxu0 0.0
  %764 = vmatmul.mubr.f32.gmra.mxu0 %v686
  %v765 = vpop.f32.mrf.mxu0
  %v766 = vadd.f32 0.0, %v765
  %v767 = vpop.f32.mrf.mxu0
  %768 = vmatprep.mubr.f32.mxu0 0.0
  %769 = vmatmul.mubr.f32.gmra.mxu0 %v689
  %v770 = vpop.f32.mrf.mxu0
  %v771 = vadd.f32 0.0, %v770
  %v772 = vpop.f32.mrf.mxu0
  %773 = vmatprep.mubr.f32.mxu0 0.0
  %774 = vmatmul.mubr.f32.gmra.mxu0 %v692
  %v775 = vpop.f32.mrf.mxu0
  %v776 = vadd.f32 0.0, %v775
  %v777 = vpop.f32.mrf.mxu0
  %778 = vdwg.mxu0
  %vm779 = vcmask 261120
  %v780 = vsel %vm779, %v761, 0.0
  %v781 = vsel %vm779, %v766, 0.0
  %v782 = vadd.f32 %v780, %v781
  %v783 = vsel %vm779, %v771, 0.0
  %v784 = vadd.f32 %v782, %v783
  %vm785 = vcmask 254976
  %v786 = vsel %vm785, %v776, 0.0
  %v787 = vadd.f32 %v784, %v786
  %v788 = vrot.slane %v787, 4
  %v789 = vadd.f32 %v787, %v788
  %v790 = vrot.slane %v789, 2
  %v791 = vadd.f32 %v789, %v790
  %v792 = vrot.slane %v791, 1
  %v793 = vadd.f32 %v791, %v792
  %v794 = vmul.f32 %v793, %v337
  %v795 = vsub.f32 %v761, %v794
  %v796 = vsub.f32 %v766, %v794
  %v797 = vsub.f32 %v771, %v794
  %v798 = vsub.f32 %v776, %v794
  %v799 = vmul.f32 %v795, %v795
  %v800 = vmul.f32 %v796, %v796
  %v801 = vmul.f32 %v797, %v797
  %v802 = vmul.f32 %v798, %v798
  %v803 = vsel %vm779, %v799, 0.0
  %v804 = vsel %vm779, %v800, 0.0
  %v805 = vadd.f32 %v803, %v804
  %v806 = vsel %vm779, %v801, 0.0
  %v807 = vadd.f32 %v805, %v806
  %v808 = vsel %vm785, %v802, 0.0
  %v809 = vadd.f32 %v807, %v808
  %v810 = vrot.slane %v809, 4
  %v811 = vadd.f32 %v809, %v810
  %v812 = vrot.slane %v811, 2
  %v813 = vadd.f32 %v811, %v812
  %v814 = vrot.slane %v813, 1
  %v815 = vadd.f32 %v813, %v814
  %v816 = vmul.f32 %v815, %v337
  %v817 = vadd.f32 %v816, 1e-05
  %v818 = vrsqrt.pop %v817
  %v819 = vmul.f32 %v795, %v818
  %v820 = vmul.f32 %v796, %v818
  %v821 = vmul.f32 %v797, %v818
  %v822 = vmul.f32 %v798, %v818
  %v823 = vld [vmem:[%s8] sm:$0x1]
  %v825 = vlaneseq
  %v826 = vshrl.u32 %v825, 7
  %v827 = vsub.s32 0, %v826
  %v828 = vrot.slane %v823, %v827
  %v830 = vmul.f32 %v819, %v828
  %v831 = vmul.f32 %v820, %v828
  %v832 = vmul.f32 %v821, %v828
  %v833 = vmul.f32 %v822, %v828
  %v834 = vld [vmem:[%s9] sm:$0x1]
  %v836 = vlaneseq
  %v837 = vshrl.u32 %v836, 7
  %v838 = vsub.s32 0, %v837
  %v839 = vrot.slane %v834, %v838
  %v841 = vadd.f32 %v830, %v839
  %v842 = vadd.f32 %v831, %v839
  %v843 = vadd.f32 %v832, %v839
  %v844 = vadd.f32 %v833, %v839
  %v845 = vadd.f32 %v841, %v298
  %v846 = vadd.f32 %v842, %v303
  %v847 = vadd.f32 %v843, %v308
  %v848 = vadd.f32 %v844, %v313
  %v849 = vld [vmem:[%s10] sm:$0x1]
  %v851 = vlaneseq
  %v852 = vshrl.u32 %v851, 7
  %v853 = vsub.s32 0, %v852
  %v854 = vrot.slane %v849, %v853
  %v856 = vadd.f32 %v845, %v854
  %v857 = vadd.f32 %v846, %v854
  %v858 = vadd.f32 %v847, %v854
  %v859 = vadd.f32 %v848, %v854
  %v860 = vmax.f32 %v856, 0.0
  %v861 = vmax.f32 %v857, 0.0
  %v862 = vmax.f32 %v858, 0.0
  %v863 = vmax.f32 %v859, 0.0
  %864 = vst.msk [vmem:[%s11] sm:$0xff] %vm779, %v860
  %865 = vst.msk [vmem:[%s11 + $0x8] sm:$0xff] %vm779, %v861
  %866 = vst.msk [vmem:[%s11 + $0x10] sm:$0xff] %vm779, %v862
  %867 = vst.msk [vmem:[%s11 + $0x18] sm:$0x3] %vm785, %v863
  // Predicated region
  $region46: #{residual_forward.1} parent=0 // pred_check
    _
  $region47: #{residual_forward.1} parent=0 // pred_check_branch
    %869 = sbr.rel (0) target = $region49
  $region48: #{residual_forward.1} parent=0 // pred_region
    _
  $region49: #{residual_forward.1} parent=0 // pred_fallthru
    _
  // Predicated region
  $region50: #{residual_forward.1} parent=0 // pred_check
    _
  $region51: #{residual_forward.1} parent=0 // pred_check_branch
    %871 = sbr.rel (0) target = $region53
  $region52: #{residual_forward.1} parent=0 // pred_region
    _
  $region53: #{residual_forward.1} parent=0 // pred_fallthru
    _

</llo_original>
